<compile_context>
chip_gen: v7x
topology: tpu7x:2x2x1
jax: 0.10.0
libtpu: 0.0.40
codegen_flags: <defaults>
</compile_context>

<pallas_src>
import functools

import jax
import jax.numpy as jnp
from jax.experimental import pallas as pl
from jax.experimental.pallas import tpu as pltpu

LANES = 128  # vreg lane width; feature dims are padded to a multiple of this


def _round_up(n, m):
    return ((n + m - 1) // m) * m


def _vmem_limit_bytes():
    # ~75% of physical VMEM, capped at 100 MiB, floored at the 32 MiB scoped default.
    # -> ~48 MiB on v7x (64 MiB physical), ~96 MiB on v5e/v6e (128 MiB physical).
    try:
        cap = pltpu.get_tpu_info().vmem_capacity_bytes
    except Exception:
        cap = 128 * 1024 * 1024
    return int(max(32 * 1024 * 1024, min((cap * 3) // 4, 100 * 1024 * 1024)))


# ----------------------------------------------------------------------------
# Single fused kernel for the whole MLP (one micro-batch per grid step)
#   refs = [w0, gamma0, beta0, w1, gamma1, beta1, ..., out_ref]
# ----------------------------------------------------------------------------
def _fused_mlp_kernel(x_ref, *refs, activations, eps, mxu_dtype):
    out_ref = refs[-1]
    params = refs[:-1]

    h = x_ref[...].astype(jnp.float32)                           # (MB, Cin_pad) f32
    for i, act in enumerate(activations):
        w = params[3 * i][...]                                   # (Cin_pad, Cout_pad), mxu_dtype
        gamma = params[3 * i + 1][...]                           # (1, Cout_pad) f32
        beta = params[3 * i + 2][...]                            # (1, Cout_pad) f32

        # Linear on the MXU.  Bias omitted: cancelled exactly by the BN mean
        # subtraction below.  Operands cast to mxu_dtype (bf16 on v6e/v7x if
        # requested), accumulation stays f32.
        y = jnp.dot(h.astype(mxu_dtype), w,
                    preferred_element_type=jnp.float32)          # (MB, Cout_pad) f32

        # BatchNorm1d, training mode (batch mean, biased batch var), affine folded
        # into a single per-feature scale.  Subtract-mean variance kept for
        # numerical stability (f32 epilogue on all generations).
        mu = jnp.mean(y, axis=0, keepdims=True)                  # (1, Cout_pad)
        d = y - mu
        var = jnp.mean(d * d, axis=0, keepdims=True)
        scale = gamma * jax.lax.rsqrt(var + eps)                 # (1, Cout_pad)
        y = d * scale + beta

        if act == "relu":
            y = jnp.maximum(y, 0.0)
        elif act == "sigmoid":
            y = jax.nn.sigmoid(y)
        # "none": identity
        h = y

    out_ref[...] = h.astype(out_ref.dtype)                       # lane-dense (MB, P) store


def fused_classifier_forward(x, padded_params, activations, n_classes,
                             in_features_padded, eps=1e-5, mxu_dtype=jnp.float32):
    """Fused forward.

    x: (B, n_input_features)            -> one forward (one set of BN stats), or
       (N, B, n_input_features)         -> N independent forwards fused into one
                                           pallas_call (one grid step each; weights
                                           stay resident in VMEM across steps).
    padded_params: [(w_pad, gamma_pad, beta_pad), ...] (w_pad already in mxu_dtype).
    """
    squeeze = (x.ndim == 2)
    if squeeze:
        x = x[None]                                              # (1, B, F)
    n_mb, mb, f = x.shape

    x = x.astype(jnp.float32)
    if f != in_features_padded:                                  # lane-dense x load
        x = jnp.pad(x, ((0, 0), (0, 0), (0, in_features_padded - f)))

    p_out = padded_params[-1][0].shape[1]                        # padded final width

    flat = []
    in_specs = [pl.BlockSpec((None, mb, in_features_padded), lambda n: (n, 0, 0))]
    for (w, g, b) in padded_params:
        flat.extend((w, g, b))
        # Constant block index -> weights/gamma/beta are fetched once and stay
        # resident in VMEM across all micro-batch grid steps.
        in_specs.append(pl.BlockSpec(w.shape, lambda n: (0, 0)))
        in_specs.append(pl.BlockSpec(g.shape, lambda n: (0, 0)))
        in_specs.append(pl.BlockSpec(b.shape, lambda n: (0, 0)))

    kernel = functools.partial(_fused_mlp_kernel, activations=tuple(activations),
                               eps=eps, mxu_dtype=mxu_dtype)

    out = pl.pallas_call(
        kernel,
        out_shape=jax.ShapeDtypeStruct((n_mb, mb, p_out), jnp.float32),
        grid_spec=pltpu.PrefetchScalarGridSpec(
            num_scalar_prefetch=0,
            grid=(n_mb,),
            in_specs=in_specs,
            out_specs=pl.BlockSpec((None, mb, p_out), lambda n: (n, 0, 0)),
        ),
        compiler_params=pltpu.CompilerParams(
            # Micro-batches are independent -> shard across TCs on v7x.
            dimension_semantics=("parallel",),
            vmem_limit_bytes=_vmem_limit_bytes(),
        ),
    )(x, *flat)

    out = out[:, :, :n_classes]
    if squeeze:
        out = out[0]
    return out


# ----------------------------------------------------------------------------
# BaseClassifier in JAX, parameters initialized deterministically in-script
# ----------------------------------------------------------------------------
class BaseClassifier:
    def __init__(self, n_layers, n_input_features, units_per_layer, n_classes,
                 sigmoid_output=True, key=None, mxu_dtype=jnp.float32):
        self.n_layers = n_layers
        self.n_input_features = n_input_features
        self.units_per_layer = units_per_layer
        self.n_classes = n_classes
        self.sigmoid_output = sigmoid_output
        self.mxu_dtype = mxu_dtype

        if key is None:
            key = jax.random.PRNGKey(0)

        # Layer topology: n_layers hidden (Linear->BN->ReLU) + final (Linear->BN->Sigmoid?)
        layer_dims = []
        for i in range(n_layers):
            cin = n_input_features if i == 0 else units_per_layer[i - 1]
            layer_dims.append((cin, units_per_layer[i], "relu"))
        cin = n_input_features if n_layers == 0 else units_per_layer[n_layers - 1]
        layer_dims.append((cin, n_classes, "sigmoid" if sigmoid_output else "none"))

        # Raw parameters (faithful to PyTorch defaults) -- used by the reference.
        self.raw_params = []
        for (cin, cout, act) in layer_dims:
            key, kw, kb = jax.random.split(key, 3)
            bound = 1.0 / (cin ** 0.5)                      # PyTorch Linear init scale
            w = jax.random.uniform(kw, (cin, cout), jnp.float32, -bound, bound)
            b = jax.random.uniform(kb, (cout,), jnp.float32, -bound, bound)
            gamma = jnp.ones((cout,), jnp.float32)          # BatchNorm1d defaults
            beta = jnp.zeros((cout,), jnp.float32)
            self.raw_params.append((w, b, gamma, beta, act))

        # Kernel parameters, pre-padded ONCE: all feature dims (including the input
        # features) -> multiple of 128 lanes, weights pre-cast to mxu_dtype.
        # Padded weight rows/cols and gamma/beta pads are zero, so padded hidden
        # channels stay exactly 0 through BN/ReLU and contribute nothing downstream.
        # The Linear bias is NOT passed to the kernel (cancelled by the BN mean).
        self.activations = tuple(p[4] for p in self.raw_params)
        self.in_features_padded = _round_up(n_input_features, LANES)
        self.padded_params = []
        prev_pad_in = self.in_features_padded
        for (w, b, gamma, beta, act) in self.raw_params:
            cin, cout = w.shape
            cout_pad = _round_up(cout, LANES)
            w_pad = jnp.zeros((prev_pad_in, cout_pad), jnp.float32).at[:cin, :cout].set(w)
            w_pad = w_pad.astype(mxu_dtype)                 # bf16 halves weight DMA/VMEM
            gamma_pad = jnp.zeros((1, cout_pad), jnp.float32).at[:, :cout].set(gamma)
            beta_pad = jnp.zeros((1, cout_pad), jnp.float32).at[:, :cout].set(beta)
            self.padded_params.append((w_pad, gamma_pad, beta_pad))
            prev_pad_in = cout_pad

    def __call__(self, x):
        return fused_classifier_forward(x, self.padded_params, self.activations,
                                        self.n_classes, self.in_features_padded,
                                        mxu_dtype=self.mxu_dtype)


# Pure-JAX reference (faithful to the PyTorch module in train() mode, including the
# Linear bias, which is cancelled by the training-mode BN mean subtraction).
def _reference_forward(model, x, eps=1e-5):
    for (w, b, gamma, beta, act) in model.raw_params:
        y = x @ w + b
        mu = jnp.mean(y, axis=0, keepdims=True)
        var = jnp.mean((y - mu) ** 2, axis=0, keepdims=True)
        y = (y - mu) / jnp.sqrt(var + eps) * gamma + beta
        if act == "relu":
            y = jnp.maximum(y, 0.0)
        elif act == "sigmoid":
            y = jax.nn.sigmoid(y)
        x = y
    return x


if __name__ == "__main__":
    key = jax.random.PRNGKey(0)
    k_model, k_x, k_xs = jax.random.split(key, 3)

    batch = 8
    n_input_features = 32
    model = BaseClassifier(
        n_layers=2,
        n_input_features=n_input_features,
        units_per_layer=[32, 16],
        n_classes=4,
        sigmoid_output=True,
        key=k_model,
    )

    # --- Single forward (one micro-batch, grid=(1,)): exact match vs f32 reference.
    x = jax.random.normal(k_x, (batch, n_input_features), jnp.float32)
    out = jax.block_until_ready(model(x))
    ref = _reference_forward(model, x)
    assert out.shape == (batch, 4), out.shape
    assert jnp.allclose(out, ref, atol=3e-5, rtol=3e-5), "single-forward mismatch vs reference"

    # --- Batched micro-batches: 4 independent forwards fused into ONE pallas_call
    # (grid=(4,), weights VMEM-resident across steps, per-micro-batch BN stats).
    n_mb = 4
    x_stack = jax.random.normal(k_xs, (n_mb, batch, n_input_features), jnp.float32)
    out_stack = jax.block_until_ready(model(x_stack))
    ref_stack = jnp.stack([_reference_forward(model, x_stack[i]) for i in range(n_mb)])
    assert out_stack.shape == (n_mb, batch, 4), out_stack.shape
    assert jnp.allclose(out_stack, ref_stack, atol=3e-5, rtol=3e-5), \
        "micro-batch grid mismatch vs reference"

    # --- bf16 MXU path (same params, weights pre-cast at init).  bf16 matmul error on
    # these O(1) activations is ~1e-2 pre-sigmoid; sigmoid compresses it further, so a
    # 0.1 absolute bound is a comfortable sanity check.
    model_bf16 = BaseClassifier(
        n_layers=2,
        n_input_features=n_input_features,
        units_per_layer=[32, 16],
        n_classes=4,
        sigmoid_output=True,
        key=k_model,
        mxu_dtype=jnp.bfloat16,
    )
    out_bf16 = jax.block_until_ready(model_bf16(x))
    assert out_bf16.shape == (batch, 4), out_bf16.shape
    assert bool(jnp.all(jnp.isfinite(out_bf16)))
    assert float(jnp.max(jnp.abs(out_bf16 - ref))) < 0.1, "bf16 path diverged from reference"

    print("KERNEL_OK")
</pallas_src>

<mosaic_0001>
module attributes {stable_mosaic.version = 11 : i64} {
  func.func @_fused_mlp_kernel(%arg0: i32, %arg1: memref<1x8x128xf32, #tpu.memory_space<vmem>>, %arg2: memref<128x128xf32, #tpu.memory_space<vmem>>, %arg3: memref<1x128xf32, #tpu.memory_space<vmem>>, %arg4: memref<1x128xf32, #tpu.memory_space<vmem>>, %arg5: memref<128x128xf32, #tpu.memory_space<vmem>>, %arg6: memref<1x128xf32, #tpu.memory_space<vmem>>, %arg7: memref<1x128xf32, #tpu.memory_space<vmem>>, %arg8: memref<128x128xf32, #tpu.memory_space<vmem>>, %arg9: memref<1x128xf32, #tpu.memory_space<vmem>>, %arg10: memref<1x128xf32, #tpu.memory_space<vmem>>, %arg11: memref<1x8x128xf32, #tpu.memory_space<vmem>>) attributes {dimension_semantics = [#tpu.dimension_semantics<parallel>], iteration_bounds = array<i64: 1>, scalar_prefetch = 0 : i64, scratch_operands = 0 : i64, tpu.core_type = #tpu.core_type<tc>, window_params = [{transform_indices = @transform_0, window_bounds = array<i64: 1, 8, 128>}, {pipeline_mode = #tpu.pipeline_mode<synchronous>, transform_indices = @transform_1, window_bounds = array<i64: 128, 128>}, {pipeline_mode = #tpu.pipeline_mode<synchronous>, transform_indices = @transform_2, window_bounds = array<i64: 1, 128>}, {pipeline_mode = #tpu.pipeline_mode<synchronous>, transform_indices = @transform_3, window_bounds = array<i64: 1, 128>}, {pipeline_mode = #tpu.pipeline_mode<synchronous>, transform_indices = @transform_4, window_bounds = array<i64: 128, 128>}, {pipeline_mode = #tpu.pipeline_mode<synchronous>, transform_indices = @transform_5, window_bounds = array<i64: 1, 128>}, {pipeline_mode = #tpu.pipeline_mode<synchronous>, transform_indices = @transform_6, window_bounds = array<i64: 1, 128>}, {pipeline_mode = #tpu.pipeline_mode<synchronous>, transform_indices = @transform_7, window_bounds = array<i64: 128, 128>}, {pipeline_mode = #tpu.pipeline_mode<synchronous>, transform_indices = @transform_8, window_bounds = array<i64: 1, 128>}, {pipeline_mode = #tpu.pipeline_mode<synchronous>, transform_indices = @transform_9, window_bounds = array<i64: 1, 128>}, {transform_indices = @transform_10, window_bounds = array<i64: 1, 8, 128>}]} {
    %c0 = arith.constant 0 : index
    %c0_0 = arith.constant 0 : index
    %c0_1 = arith.constant 0 : index
    %0 = vector.load %arg1[%c0, %c0_0, %c0_1] : memref<1x8x128xf32, #tpu.memory_space<vmem>>, vector<1x8x128xf32>
    %1 = vector.shape_cast %0 : vector<1x8x128xf32> to vector<8x128xf32>
    %c0_2 = arith.constant 0 : index
    %c0_3 = arith.constant 0 : index
    %2 = vector.load %arg2[%c0_2, %c0_3] : memref<128x128xf32, #tpu.memory_space<vmem>>, vector<128x128xf32>
    %c0_4 = arith.constant 0 : index
    %c0_5 = arith.constant 0 : index
    %3 = vector.load %arg3[%c0_4, %c0_5] : memref<1x128xf32, #tpu.memory_space<vmem>>, vector<1x128xf32>
    %c0_6 = arith.constant 0 : index
    %c0_7 = arith.constant 0 : index
    %4 = vector.load %arg4[%c0_6, %c0_7] : memref<1x128xf32, #tpu.memory_space<vmem>>, vector<1x128xf32>
    %cst = arith.constant dense<0.000000e+00> : vector<8x128xf32>
    %5 = tpu.matmul %1, %2, %cst {dimension_numbers = #tpu.dot_dimension_numbers<[1], [0], [0], [1], [0, 0, 1, 1], [], []>} : vector<8x128xf32>, vector<128x128xf32>, vector<8x128xf32> -> vector<8x128xf32>
    %cst_8 = arith.constant dense<0.000000e+00> : vector<128xf32>
    %6 = vector.multi_reduction <add>, %5, %cst_8 [0] : vector<8x128xf32> to vector<128xf32>
    %7 = vector.shape_cast %6 : vector<128xf32> to vector<1x128xf32>
    %cst_9 = arith.constant 8.000000e+00 : f32
    %8 = vector.broadcast %cst_9 : f32 to vector<1x128xf32>
    %9 = arith.divf %7, %8 : vector<1x128xf32>
    %10 = vector.broadcast %9 : vector<1x128xf32> to vector<8x128xf32>
    %11 = arith.subf %5, %10 : vector<8x128xf32>
    %12 = arith.mulf %11, %11 : vector<8x128xf32>
    %cst_10 = arith.constant dense<0.000000e+00> : vector<128xf32>
    %13 = vector.multi_reduction <add>, %12, %cst_10 [0] : vector<8x128xf32> to vector<128xf32>
    %14 = vector.shape_cast %13 : vector<128xf32> to vector<1x128xf32>
    %cst_11 = arith.constant 8.000000e+00 : f32
    %15 = vector.broadcast %cst_11 : f32 to vector<1x128xf32>
    %16 = arith.divf %14, %15 : vector<1x128xf32>
    %cst_12 = arith.constant 9.99999974E-6 : f32
    %17 = vector.broadcast %cst_12 : f32 to vector<1x128xf32>
    %18 = arith.addf %16, %17 : vector<1x128xf32>
    %19 = math.rsqrt %18 : vector<1x128xf32>
    %20 = arith.mulf %3, %19 : vector<1x128xf32>
    %21 = vector.broadcast %20 : vector<1x128xf32> to vector<8x128xf32>
    %22 = arith.mulf %11, %21 : vector<8x128xf32>
    %23 = vector.broadcast %4 : vector<1x128xf32> to vector<8x128xf32>
    %24 = arith.addf %22, %23 : vector<8x128xf32>
    %cst_13 = arith.constant 0.000000e+00 : f32
    %25 = vector.broadcast %cst_13 : f32 to vector<8x128xf32>
    %26 = arith.maximumf %24, %25 : vector<8x128xf32>
    %c0_14 = arith.constant 0 : index
    %c0_15 = arith.constant 0 : index
    %27 = vector.load %arg5[%c0_14, %c0_15] : memref<128x128xf32, #tpu.memory_space<vmem>>, vector<128x128xf32>
    %c0_16 = arith.constant 0 : index
    %c0_17 = arith.constant 0 : index
    %28 = vector.load %arg6[%c0_16, %c0_17] : memref<1x128xf32, #tpu.memory_space<vmem>>, vector<1x128xf32>
    %c0_18 = arith.constant 0 : index
    %c0_19 = arith.constant 0 : index
    %29 = vector.load %arg7[%c0_18, %c0_19] : memref<1x128xf32, #tpu.memory_space<vmem>>, vector<1x128xf32>
    %cst_20 = arith.constant dense<0.000000e+00> : vector<8x128xf32>
    %30 = tpu.matmul %26, %27, %cst_20 {dimension_numbers = #tpu.dot_dimension_numbers<[1], [0], [0], [1], [0, 0, 1, 1], [], []>} : vector<8x128xf32>, vector<128x128xf32>, vector<8x128xf32> -> vector<8x128xf32>
    %cst_21 = arith.constant dense<0.000000e+00> : vector<128xf32>
    %31 = vector.multi_reduction <add>, %30, %cst_21 [0] : vector<8x128xf32> to vector<128xf32>
    %32 = vector.shape_cast %31 : vector<128xf32> to vector<1x128xf32>
    %cst_22 = arith.constant 8.000000e+00 : f32
    %33 = vector.broadcast %cst_22 : f32 to vector<1x128xf32>
    %34 = arith.divf %32, %33 : vector<1x128xf32>
    %35 = vector.broadcast %34 : vector<1x128xf32> to vector<8x128xf32>
    %36 = arith.subf %30, %35 : vector<8x128xf32>
    %37 = arith.mulf %36, %36 : vector<8x128xf32>
    %cst_23 = arith.constant dense<0.000000e+00> : vector<128xf32>
    %38 = vector.multi_reduction <add>, %37, %cst_23 [0] : vector<8x128xf32> to vector<128xf32>
    %39 = vector.shape_cast %38 : vector<128xf32> to vector<1x128xf32>
    %cst_24 = arith.constant 8.000000e+00 : f32
    %40 = vector.broadcast %cst_24 : f32 to vector<1x128xf32>
    %41 = arith.divf %39, %40 : vector<1x128xf32>
    %cst_25 = arith.constant 9.99999974E-6 : f32
    %42 = vector.broadcast %cst_25 : f32 to vector<1x128xf32>
    %43 = arith.addf %41, %42 : vector<1x128xf32>
    %44 = math.rsqrt %43 : vector<1x128xf32>
    %45 = arith.mulf %28, %44 : vector<1x128xf32>
    %46 = vector.broadcast %45 : vector<1x128xf32> to vector<8x128xf32>
    %47 = arith.mulf %36, %46 : vector<8x128xf32>
    %48 = vector.broadcast %29 : vector<1x128xf32> to vector<8x128xf32>
    %49 = arith.addf %47, %48 : vector<8x128xf32>
    %cst_26 = arith.constant 0.000000e+00 : f32
    %50 = vector.broadcast %cst_26 : f32 to vector<8x128xf32>
    %51 = arith.maximumf %49, %50 : vector<8x128xf32>
    %c0_27 = arith.constant 0 : index
    %c0_28 = arith.constant 0 : index
    %52 = vector.load %arg8[%c0_27, %c0_28] : memref<128x128xf32, #tpu.memory_space<vmem>>, vector<128x128xf32>
    %c0_29 = arith.constant 0 : index
    %c0_30 = arith.constant 0 : index
    %53 = vector.load %arg9[%c0_29, %c0_30] : memref<1x128xf32, #tpu.memory_space<vmem>>, vector<1x128xf32>
    %c0_31 = arith.constant 0 : index
    %c0_32 = arith.constant 0 : index
    %54 = vector.load %arg10[%c0_31, %c0_32] : memref<1x128xf32, #tpu.memory_space<vmem>>, vector<1x128xf32>
    %cst_33 = arith.constant dense<0.000000e+00> : vector<8x128xf32>
    %55 = tpu.matmul %51, %52, %cst_33 {dimension_numbers = #tpu.dot_dimension_numbers<[1], [0], [0], [1], [0, 0, 1, 1], [], []>} : vector<8x128xf32>, vector<128x128xf32>, vector<8x128xf32> -> vector<8x128xf32>
    %cst_34 = arith.constant dense<0.000000e+00> : vector<128xf32>
    %56 = vector.multi_reduction <add>, %55, %cst_34 [0] : vector<8x128xf32> to vector<128xf32>
    %57 = vector.shape_cast %56 : vector<128xf32> to vector<1x128xf32>
    %cst_35 = arith.constant 8.000000e+00 : f32
    %58 = vector.broadcast %cst_35 : f32 to vector<1x128xf32>
    %59 = arith.divf %57, %58 : vector<1x128xf32>
    %60 = vector.broadcast %59 : vector<1x128xf32> to vector<8x128xf32>
    %61 = arith.subf %55, %60 : vector<8x128xf32>
    %62 = arith.mulf %61, %61 : vector<8x128xf32>
    %cst_36 = arith.constant dense<0.000000e+00> : vector<128xf32>
    %63 = vector.multi_reduction <add>, %62, %cst_36 [0] : vector<8x128xf32> to vector<128xf32>
    %64 = vector.shape_cast %63 : vector<128xf32> to vector<1x128xf32>
    %cst_37 = arith.constant 8.000000e+00 : f32
    %65 = vector.broadcast %cst_37 : f32 to vector<1x128xf32>
    %66 = arith.divf %64, %65 : vector<1x128xf32>
    %cst_38 = arith.constant 9.99999974E-6 : f32
    %67 = vector.broadcast %cst_38 : f32 to vector<1x128xf32>
    %68 = arith.addf %66, %67 : vector<1x128xf32>
    %69 = math.rsqrt %68 : vector<1x128xf32>
    %70 = arith.mulf %53, %69 : vector<1x128xf32>
    %71 = vector.broadcast %70 : vector<1x128xf32> to vector<8x128xf32>
    %72 = arith.mulf %61, %71 : vector<8x128xf32>
    %73 = vector.broadcast %54 : vector<1x128xf32> to vector<8x128xf32>
    %74 = arith.addf %72, %73 : vector<8x128xf32>
    %75 = arith.negf %74 : vector<8x128xf32>
    %76 = math.exp %75 : vector<8x128xf32>
    %cst_39 = arith.constant 1.000000e+00 : f32
    %77 = vector.broadcast %cst_39 : f32 to vector<8x128xf32>
    %78 = arith.addf %77, %76 : vector<8x128xf32>
    %79 = arith.divf %77, %78 : vector<8x128xf32>
    %c0_40 = arith.constant 0 : index
    %c0_41 = arith.constant 0 : index
    %c0_42 = arith.constant 0 : index
    %80 = vector.load %arg11[%c0_40, %c0_41, %c0_42] : memref<1x8x128xf32, #tpu.memory_space<vmem>>, vector<1x8x128xf32>
    %81 = vector.shape_cast %80 : vector<1x8x128xf32> to vector<8x128xf32>
    %82 = vector.shape_cast %79 : vector<8x128xf32> to vector<1x8x128xf32>
    tpu.vector_store %arg11[%c0_40, %c0_41, %c0_42], %82 {strides = array<i32>} : memref<1x8x128xf32, #tpu.memory_space<vmem>>, vector<1x8x128xf32>,
    return
  }
  func.func @transform_0(%arg0: i32) -> (i32, i32, i32) {
    %c0_i32 = arith.constant 0 : i32
    %c0_i32_0 = arith.constant 0 : i32
    %c0_i32_1 = arith.constant 0 : i32
    return %arg0, %c0_i32, %c0_i32_0 : i32, i32, i32
  }
  func.func @transform_1(%arg0: i32) -> (i32, i32) {
    %c0_i32 = arith.constant 0 : i32
    %c0_i32_0 = arith.constant 0 : i32
    %c0_i32_1 = arith.constant 0 : i32
    return %c0_i32, %c0_i32_0 : i32, i32
  }
  func.func @transform_2(%arg0: i32) -> (i32, i32) {
    %c0_i32 = arith.constant 0 : i32
    %c0_i32_0 = arith.constant 0 : i32
    %c0_i32_1 = arith.constant 0 : i32
    return %c0_i32, %c0_i32_0 : i32, i32
  }
  func.func @transform_3(%arg0: i32) -> (i32, i32) {
    %c0_i32 = arith.constant 0 : i32
    %c0_i32_0 = arith.constant 0 : i32
    %c0_i32_1 = arith.constant 0 : i32
    return %c0_i32, %c0_i32_0 : i32, i32
  }
  func.func @transform_4(%arg0: i32) -> (i32, i32) {
    %c0_i32 = arith.constant 0 : i32
    %c0_i32_0 = arith.constant 0 : i32
    %c0_i32_1 = arith.constant 0 : i32
    return %c0_i32, %c0_i32_0 : i32, i32
  }
  func.func @transform_5(%arg0: i32) -> (i32, i32) {
    %c0_i32 = arith.constant 0 : i32
    %c0_i32_0 = arith.constant 0 : i32
    %c0_i32_1 = arith.constant 0 : i32
    return %c0_i32, %c0_i32_0 : i32, i32
  }
  func.func @transform_6(%arg0: i32) -> (i32, i32) {
    %c0_i32 = arith.constant 0 : i32
    %c0_i32_0 = arith.constant 0 : i32
    %c0_i32_1 = arith.constant 0 : i32
    return %c0_i32, %c0_i32_0 : i32, i32
  }
  func.func @transform_7(%arg0: i32) -> (i32, i32) {
    %c0_i32 = arith.constant 0 : i32
    %c0_i32_0 = arith.constant 0 : i32
    %c0_i32_1 = arith.constant 0 : i32
    return %c0_i32, %c0_i32_0 : i32, i32
  }
  func.func @transform_8(%arg0: i32) -> (i32, i32) {
    %c0_i32 = arith.constant 0 : i32
    %c0_i32_0 = arith.constant 0 : i32
    %c0_i32_1 = arith.constant 0 : i32
    return %c0_i32, %c0_i32_0 : i32, i32
  }
  func.func @transform_9(%arg0: i32) -> (i32, i32) {
    %c0_i32 = arith.constant 0 : i32
    %c0_i32_0 = arith.constant 0 : i32
    %c0_i32_1 = arith.constant 0 : i32
    return %c0_i32, %c0_i32_0 : i32, i32
  }
  func.func @transform_10(%arg0: i32) -> (i32, i32, i32) {
    %c0_i32 = arith.constant 0 : i32
    %c0_i32_0 = arith.constant 0 : i32
    %c0_i32_1 = arith.constant 0 : i32
    return %arg0, %c0_i32, %c0_i32_0 : i32, i32, i32
  }
}

</mosaic_0001>

<llo_original>
// kernel: tpu_custom_call.1
$region0: #{tpu_custom_call.1}
  #allocation0 [shape = 'u32[]', space=smem, size = 0x4, offset = 0x4, fixed_abs, tag = 'smem constant byte address 0x4 - core index']
  #allocation1 [shape = 'u32[144,128]{1,0:T(1,128)}', space=vmem, size = 0x12000, scoped, tag = 'internal scratch']
  %s0 = inlined_call_operand.hbm [shape: f32[1,8,128], index: 0, kind: input, shape index: {}]
  %s1 = inlined_call_operand.hbm [shape: f32[128,128], index: 1, kind: input, shape index: {}]
  %s2 = inlined_call_operand.hbm [shape: f32[1,128], index: 2, kind: input, shape index: {}]
  %s3 = inlined_call_operand.hbm [shape: f32[1,128], index: 3, kind: input, shape index: {}]
  %s4 = inlined_call_operand.hbm [shape: f32[128,128], index: 4, kind: input, shape index: {}]
  %s5 = inlined_call_operand.hbm [shape: f32[1,128], index: 5, kind: input, shape index: {}]
  %s6 = inlined_call_operand.hbm [shape: f32[1,128], index: 6, kind: input, shape index: {}]
  %s7 = inlined_call_operand.hbm [shape: f32[128,128], index: 7, kind: input, shape index: {}]
  %s8 = inlined_call_operand.hbm [shape: f32[1,128], index: 8, kind: input, shape index: {}]
  %s9 = inlined_call_operand.hbm [shape: f32[1,128], index: 9, kind: input, shape index: {}]
  %s10 = inlined_call_operand.hbm [shape: f32[1,8,128], index: 10, kind: output, shape index: {}]
  %s11 = sld [smem:[#allocation0]]
  $region90: #{tpu_custom_call.1} parent=0
    _
  %s13 = ssub.s32 1, %s11
  %s14 = scalar_select 0, %s13, %s11
  $region1: #{tpu_custom_call.1} parent=0
    #allocation2 [shape = 'u8[4096]{0}', space=vmem, size = 0x1000, scoped, tag = 'input window, operand 0, single buffered']
    #allocation3 [shape = 's32[1]{0}', space=sflag, size = 0x4, scoped, tag = 'scoped memory for tpu_custom_call.1']
    #allocation4 [shape = 's32[1]{0}', space=sflag, size = 0x4, scoped, tag = 'scoped memory for tpu_custom_call.1']
    #allocation5 [shape = 'u8[65536]{0}', space=vmem, size = 0x10000, scoped, tag = 'input window, operand 1, single buffered']
    #allocation6 [shape = 's32[1]{0}', space=sflag, size = 0x4, scoped, tag = 'scoped memory for tpu_custom_call.1']
    #allocation7 [shape = 'u8[512]{0}', space=vmem, size = 0x400, scoped, tag = 'input window, operand 2, single buffered']
    #allocation8 [shape = 'u8[512]{0}', space=vmem, size = 0x400, scoped, tag = 'input window, operand 3, single buffered']
    #allocation9 [shape = 's32[1]{0}', space=sflag, size = 0x4, scoped, tag = 'scoped memory for tpu_custom_call.1']
    #allocation10 [shape = 'u8[65536]{0}', space=vmem, size = 0x10000, scoped, tag = 'input window, operand 4, single buffered']
    #allocation11 [shape = 'u8[512]{0}', space=vmem, size = 0x400, scoped, tag = 'input window, operand 5, single buffered']
    #allocation12 [shape = 's32[1]{0}', space=sflag, size = 0x4, scoped, tag = 'scoped memory for tpu_custom_call.1']
    #allocation13 [shape = 'u8[512]{0}', space=vmem, size = 0x400, scoped, tag = 'input window, operand 6, single buffered']
    #allocation14 [shape = 'u8[65536]{0}', space=vmem, size = 0x10000, scoped, tag = 'input window, operand 7, single buffered']
    #allocation15 [shape = 's32[1]{0}', space=sflag, size = 0x4, scoped, tag = 'scoped memory for tpu_custom_call.1']
    #allocation16 [shape = 'u8[512]{0}', space=vmem, size = 0x400, scoped, tag = 'input window, operand 8, single buffered']
    #allocation17 [shape = 'u8[512]{0}', space=vmem, size = 0x400, scoped, tag = 'input window, operand 9, single buffered']
    #allocation18 [shape = 's32[1]{0}', space=sflag, size = 0x4, scoped, tag = 'scoped memory for tpu_custom_call.1']
    #allocation19 [shape = 'u8[4096]{0}', space=vmem, size = 0x1000, scoped, tag = 'output window, operand 0, single buffered']
    %15 = vsyncpa [#allocation3], 0
    %16 = vsyncpa [#allocation6], 0
    %17 = vsyncpa [#allocation9], 0
    %18 = vsyncpa [#allocation12], 0
    %19 = vsyncpa [#allocation15], 0
    %20 = vsyncpa [#allocation18], 0
    %21 = vsyncpa [#allocation4], 0
    // Predicated region
    $region2: #{tpu_custom_call.1} parent=1 // pred_check
      _
    $region3: #{tpu_custom_call.1} parent=1 // pred_check_branch
      %23 = sbr.rel (0) target = $region5
    $region4: #{tpu_custom_call.1} parent=1 // pred_region
      %s25 = ssub.s32 128, 128
      %26 = vsyncadd [#allocation3], %s25
      %s28 = sshll.u32 [#allocation2], 4
      %s29 = int_to_ptr.vmem [resolvable:$true] %s28
      %31 = dma.hbm_to_vmem [thread:$0]  %s0, 128, %s29, [#allocation3]
    $region5: #{tpu_custom_call.1} parent=1 // pred_fallthru
      _
    // Predicated region
    $region6: #{tpu_custom_call.1} parent=1 // pred_check
      _
    $region7: #{tpu_custom_call.1} parent=1 // pred_check_branch
      %33 = sbr.rel (0) target = $region9
    $region8: #{tpu_custom_call.1} parent=1 // pred_region
      %s35 = ssub.s32 2048, 2048
      %36 = vsyncadd [#allocation6], %s35
      %s37 = sshll.u32 [#allocation5], 4
      %s38 = int_to_ptr.vmem [resolvable:$true] %s37
      %43 = dma.hbm_to_vmem [thread:$0]  %s1, 2048, %s38, [#allocation6], 128, 128, 8
    $region9: #{tpu_custom_call.1} parent=1 // pred_fallthru
      _
    // Predicated region
    $region10: #{tpu_custom_call.1} parent=1 // pred_check
      _
    $region11: #{tpu_custom_call.1} parent=1 // pred_check_branch
      %45 = sbr.rel (0) target = $region13
    $region12: #{tpu_custom_call.1} parent=1 // pred_region
      %s47 = ssub.s32 16, 16
      %48 = vsyncadd [#allocation6], %s47
      %s50 = sshll.u32 [#allocation7], 4
      %s51 = int_to_ptr.vmem [resolvable:$true] %s50
      %53 = dma.hbm_to_vmem [thread:$0]  %s2, 16, %s51, [#allocation6]
    $region13: #{tpu_custom_call.1} parent=1 // pred_fallthru
      _
    // Predicated region
    $region14: #{tpu_custom_call.1} parent=1 // pred_check
      _
    $region15: #{tpu_custom_call.1} parent=1 // pred_check_branch
      %55 = sbr.rel (0) target = $region17
    $region16: #{tpu_custom_call.1} parent=1 // pred_region
      %s57 = ssub.s32 16, 16
      %58 = vsyncadd [#allocation9], %s57
      %s60 = sshll.u32 [#allocation8], 4
      %s61 = int_to_ptr.vmem [resolvable:$true] %s60
      %63 = dma.hbm_to_vmem [thread:$0]  %s3, 16, %s61, [#allocation9]
    $region17: #{tpu_custom_call.1} parent=1 // pred_fallthru
      _
    // Predicated region
    $region18: #{tpu_custom_call.1} parent=1 // pred_check
      _
    $region19: #{tpu_custom_call.1} parent=1 // pred_check_branch
      %65 = sbr.rel (0) target = $region21
    $region20: #{tpu_custom_call.1} parent=1 // pred_region
      %s67 = ssub.s32 2048, 2048
      %68 = vsyncadd [#allocation9], %s67
      %s69 = sshll.u32 [#allocation10], 4
      %s70 = int_to_ptr.vmem [resolvable:$true] %s69
      %75 = dma.hbm_to_vmem [thread:$0]  %s4, 2048, %s70, [#allocation9], 128, 128, 8
    $region21: #{tpu_custom_call.1} parent=1 // pred_fallthru
      _
    // Predicated region
    $region22: #{tpu_custom_call.1} parent=1 // pred_check
      _
    $region23: #{tpu_custom_call.1} parent=1 // pred_check_branch
      %77 = sbr.rel (0) target = $region25
    $region24: #{tpu_custom_call.1} parent=1 // pred_region
      %s79 = ssub.s32 16, 16
      %80 = vsyncadd [#allocation12], %s79
      %s82 = sshll.u32 [#allocation11], 4
      %s83 = int_to_ptr.vmem [resolvable:$true] %s82
      %85 = dma.hbm_to_vmem [thread:$0]  %s5, 16, %s83, [#allocation12]
    $region25: #{tpu_custom_call.1} parent=1 // pred_fallthru
      _
    // Predicated region
    $region26: #{tpu_custom_call.1} parent=1 // pred_check
      _
    $region27: #{tpu_custom_call.1} parent=1 // pred_check_branch
      %87 = sbr.rel (0) target = $region29
    $region28: #{tpu_custom_call.1} parent=1 // pred_region
      %s89 = ssub.s32 16, 16
      %90 = vsyncadd [#allocation12], %s89
      %s92 = sshll.u32 [#allocation13], 4
      %s93 = int_to_ptr.vmem [resolvable:$true] %s92
      %95 = dma.hbm_to_vmem [thread:$0]  %s6, 16, %s93, [#allocation12]
    $region29: #{tpu_custom_call.1} parent=1 // pred_fallthru
      _
    // Predicated region
    $region30: #{tpu_custom_call.1} parent=1 // pred_check
      _
    $region31: #{tpu_custom_call.1} parent=1 // pred_check_branch
      %97 = sbr.rel (0) target = $region33
    $region32: #{tpu_custom_call.1} parent=1 // pred_region
      %s99 = ssub.s32 2048, 2048
      %100 = vsyncadd [#allocation15], %s99
      %s101 = sshll.u32 [#allocation14], 4
      %s102 = int_to_ptr.vmem [resolvable:$true] %s101
      %107 = dma.hbm_to_vmem [thread:$0]  %s7, 2048, %s102, [#allocation15], 128, 128, 8
    $region33: #{tpu_custom_call.1} parent=1 // pred_fallthru
      _
    // Predicated region
    $region34: #{tpu_custom_call.1} parent=1 // pred_check
      _
    $region35: #{tpu_custom_call.1} parent=1 // pred_check_branch
      %109 = sbr.rel (0) target = $region37
    $region36: #{tpu_custom_call.1} parent=1 // pred_region
      %s111 = ssub.s32 16, 16
      %112 = vsyncadd [#allocation15], %s111
      %s114 = sshll.u32 [#allocation16], 4
      %s115 = int_to_ptr.vmem [resolvable:$true] %s114
      %117 = dma.hbm_to_vmem [thread:$0]  %s8, 16, %s115, [#allocation15]
    $region37: #{tpu_custom_call.1} parent=1 // pred_fallthru
      _
    // Predicated region
    $region38: #{tpu_custom_call.1} parent=1 // pred_check
      _
    $region39: #{tpu_custom_call.1} parent=1 // pred_check_branch
      %119 = sbr.rel (0) target = $region41
    $region40: #{tpu_custom_call.1} parent=1 // pred_region
      %s121 = ssub.s32 16, 16
      %122 = vsyncadd [#allocation18], %s121
      %s124 = sshll.u32 [#allocation17], 4
      %s125 = int_to_ptr.vmem [resolvable:$true] %s124
      %127 = dma.hbm_to_vmem [thread:$0]  %s9, 16, %s125, [#allocation18]
    $region41: #{tpu_custom_call.1} parent=1 // pred_fallthru
      _
    // Predicated region
    $region42: #{tpu_custom_call.1} parent=1 // pred_check
      _
    $region43: #{tpu_custom_call.1} parent=1 // pred_check_branch
      %129 = sbr.rel (0) target = $region45
    $region44: #{tpu_custom_call.1} parent=1 // pred_region
      %130 = dma.done [#allocation3], 128
    $region45: #{tpu_custom_call.1} parent=1 // pred_fallthru
      _
    // Predicated region
    $region46: #{tpu_custom_call.1} parent=1 // pred_check
      _
    $region47: #{tpu_custom_call.1} parent=1 // pred_check_branch
      %132 = sbr.rel (0) target = $region49
    $region48: #{tpu_custom_call.1} parent=1 // pred_region
      %133 = dma.done [#allocation6], 2048
    $region49: #{tpu_custom_call.1} parent=1 // pred_fallthru
      _
    // Predicated region
    $region50: #{tpu_custom_call.1} parent=1 // pred_check
      _
    $region51: #{tpu_custom_call.1} parent=1 // pred_check_branch
      %135 = sbr.rel (0) target = $region53
    $region52: #{tpu_custom_call.1} parent=1 // pred_region
      %136 = dma.done [#allocation6], 16
    $region53: #{tpu_custom_call.1} parent=1 // pred_fallthru
      _
    // Predicated region
    $region54: #{tpu_custom_call.1} parent=1 // pred_check
      _
    $region55: #{tpu_custom_call.1} parent=1 // pred_check_branch
      %138 = sbr.rel (0) target = $region57
    $region56: #{tpu_custom_call.1} parent=1 // pred_region
      %139 = dma.done [#allocation9], 16
    $region57: #{tpu_custom_call.1} parent=1 // pred_fallthru
      _
    // Predicated region
    $region58: #{tpu_custom_call.1} parent=1 // pred_check
      _
    $region59: #{tpu_custom_call.1} parent=1 // pred_check_branch
      %141 = sbr.rel (0) target = $region61
    $region60: #{tpu_custom_call.1} parent=1 // pred_region
      %142 = dma.done [#allocation9], 2048
    $region61: #{tpu_custom_call.1} parent=1 // pred_fallthru
      _
    // Predicated region
    $region62: #{tpu_custom_call.1} parent=1 // pred_check
      _
    $region63: #{tpu_custom_call.1} parent=1 // pred_check_branch
      %144 = sbr.rel (0) target = $region65
    $region64: #{tpu_custom_call.1} parent=1 // pred_region
      %145 = dma.done [#allocation12], 16
    $region65: #{tpu_custom_call.1} parent=1 // pred_fallthru
      _
    // Predicated region
    $region66: #{tpu_custom_call.1} parent=1 // pred_check
      _
    $region67: #{tpu_custom_call.1} parent=1 // pred_check_branch
      %147 = sbr.rel (0) target = $region69
    $region68: #{tpu_custom_call.1} parent=1 // pred_region
      %148 = dma.done [#allocation12], 16
    $region69: #{tpu_custom_call.1} parent=1 // pred_fallthru
      _
    // Predicated region
    $region70: #{tpu_custom_call.1} parent=1 // pred_check
      _
    $region71: #{tpu_custom_call.1} parent=1 // pred_check_branch
      %150 = sbr.rel (0) target = $region73
    $region72: #{tpu_custom_call.1} parent=1 // pred_region
      %151 = dma.done [#allocation15], 2048
    $region73: #{tpu_custom_call.1} parent=1 // pred_fallthru
      _
    // Predicated region
    $region74: #{tpu_custom_call.1} parent=1 // pred_check
      _
    $region75: #{tpu_custom_call.1} parent=1 // pred_check_branch
      %153 = sbr.rel (0) target = $region77
    $region76: #{tpu_custom_call.1} parent=1 // pred_region
      %154 = dma.done [#allocation15], 16
    $region77: #{tpu_custom_call.1} parent=1 // pred_fallthru
      _
    // Predicated region
    $region78: #{tpu_custom_call.1} parent=1 // pred_check
      _
    $region79: #{tpu_custom_call.1} parent=1 // pred_check_branch
      %156 = sbr.rel (0) target = $region81
    $region80: #{tpu_custom_call.1} parent=1 // pred_region
      %157 = dma.done [#allocation18], 16
    $region81: #{tpu_custom_call.1} parent=1 // pred_fallthru
      _
    %v158 = vld [vmem:[#allocation2] sm:$0xff]
    %v159 = vld [vmem:[#allocation5] sm:$0xff]
    %v160 = vld [vmem:[#allocation5 + $0x8] sm:$0xff]
    %v161 = vld [vmem:[#allocation5 + $0x10] sm:$0xff]
    %v162 = vld [vmem:[#allocation5 + $0x18] sm:$0xff]
    %v163 = vld [vmem:[#allocation5 + $0x20] sm:$0xff]
    %v164 = vld [vmem:[#allocation5 + $0x28] sm:$0xff]
    %v165 = vld [vmem:[#allocation5 + $0x30] sm:$0xff]
    %v166 = vld [vmem:[#allocation5 + $0x38] sm:$0xff]
    %v167 = vld [vmem:[#allocation5 + $0x40] sm:$0xff]
    %v168 = vld [vmem:[#allocation5 + $0x48] sm:$0xff]
    %v169 = vld [vmem:[#allocation5 + $0x50] sm:$0xff]
    %v170 = vld [vmem:[#allocation5 + $0x58] sm:$0xff]
    %v171 = vld [vmem:[#allocation5 + $0x60] sm:$0xff]
    %v172 = vld [vmem:[#allocation5 + $0x68] sm:$0xff]
    %v173 = vld [vmem:[#allocation5 + $0x70] sm:$0xff]
    %v174 = vld [vmem:[#allocation5 + $0x78] sm:$0xff]
    %v175 = vld [vmem:[#allocation7] sm:$0x1]
    %v176 = vld [vmem:[#allocation8] sm:$0x1]
    %177 = vmatprep.subr.mxu0 0.0
    %178 = vmatpush1.msra.mxu0 %v159
    %179 = vmatprep.subr.mxu0 0.0
    %180 = vmatpush1.msra.mxu0 %v160
    %181 = vmatprep.subr.mxu0 0.0
    %182 = vmatpush1.msra.mxu0 %v161
    %183 = vmatprep.subr.mxu0 0.0
    %184 = vmatpush1.msra.mxu0 %v162
    %185 = vmatprep.subr.mxu0 0.0
    %186 = vmatpush1.msra.mxu0 %v163
    %187 = vmatprep.subr.mxu0 0.0
    %188 = vmatpush1.msra.mxu0 %v164
    %189 = vmatprep.subr.mxu0 0.0
    %190 = vmatpush1.msra.mxu0 %v165
    %191 = vmatprep.subr.mxu0 0.0
    %192 = vmatpush1.msra.mxu0 %v166
    %193 = vmatprep.subr.mxu0 0.0
    %194 = vmatpush1.msra.mxu0 %v167
    %195 = vmatprep.subr.mxu0 0.0
    %196 = vmatpush1.msra.mxu0 %v168
    %197 = vmatprep.subr.mxu0 0.0
    %198 = vmatpush1.msra.mxu0 %v169
    %199 = vmatprep.subr.mxu0 0.0
    %200 = vmatpush1.msra.mxu0 %v170
    %201 = vmatprep.subr.mxu0 0.0
    %202 = vmatpush1.msra.mxu0 %v171
    %203 = vmatprep.subr.mxu0 0.0
    %204 = vmatpush1.msra.mxu0 %v172
    %205 = vmatprep.subr.mxu0 0.0
    %206 = vmatpush1.msra.mxu0 %v173
    %207 = vmatprep.subr.mxu0 0.0
    %208 = vmatpush1.msra.mxu0 %v174
    %209 = vmatprep.subr.mxu0 0.0
    %210 = vmatpush1.msra.mxu0 0.0
    %211 = vmatprep.subr.mxu0 0.0
    %212 = vmatpush1.msra.mxu0 0.0
    %213 = vmatprep.subr.mxu0 0.0
    %214 = vmatpush1.msra.mxu0 0.0
    %215 = vmatprep.subr.mxu0 0.0
    %216 = vmatpush1.msra.mxu0 0.0
    %217 = vmatprep.subr.mxu0 0.0
    %218 = vmatpush1.msra.mxu0 0.0
    %219 = vmatprep.subr.mxu0 0.0
    %220 = vmatpush1.msra.mxu0 0.0
    %221 = vmatprep.subr.mxu0 0.0
    %222 = vmatpush1.msra.mxu0 0.0
    %223 = vmatprep.subr.mxu0 0.0
    %224 = vmatpush1.msra.mxu0 0.0
    %225 = vmatprep.subr.mxu0 0.0
    %226 = vmatpush1.msra.mxu0 0.0
    %227 = vmatprep.subr.mxu0 0.0
    %228 = vmatpush1.msra.mxu0 0.0
    %229 = vmatprep.subr.mxu0 0.0
    %230 = vmatpush1.msra.mxu0 0.0
    %231 = vmatprep.subr.mxu0 0.0
    %232 = vmatpush1.msra.mxu0 0.0
    %233 = vmatprep.subr.mxu0 0.0
    %234 = vmatpush1.msra.mxu0 0.0
    %235 = vmatprep.subr.mxu0 0.0
    %236 = vmatpush1.msra.mxu0 0.0
    %237 = vmatprep.subr.mxu0 0.0
    %238 = vmatpush1.msra.mxu0 0.0
    %239 = vmatprep.subr.mxu0 0.0
    %240 = vmatpush1.msra.mxu0 0.0
    %241 = vmatprep.mubr.f32.mxu0 0.0
    %242 = vmatmul.mubr.f32.gmra.mrb[0].mxu0 %v158
    %v243 = vpop.f32.mrb[0].mxu0
    %v244 = vadd.f32 0.0, %v243
    %v245 = vpop.f32.mrb[0].mxu0
    %246 = vdwg.mxu0
    %v247 = vrot.slane %v244, 4
    %v248 = vadd.f32 %v244, %v247
    %v249 = vrot.slane %v248, 2
    %v250 = vadd.f32 %v248, %v249
    %v251 = vrot.slane %v250, 1
    %v252 = vadd.f32 %v250, %v251
    %v253 = vrcp.pop 8.0
    %v254 = vmul.f32 %v252, %v253
    %v255 = vsub.f32 %v244, %v254
    %v256 = vmul.f32 %v255, %v255
    %v257 = vrot.slane %v256, 4
    %v258 = vadd.f32 %v256, %v257
    %v259 = vrot.slane %v258, 2
    %v260 = vadd.f32 %v258, %v259
    %v261 = vrot.slane %v260, 1
    %v262 = vadd.f32 %v260, %v261
    %v263 = vmul.f32 %v262, %v253
    %v264 = vadd.f32 %v263, 1e-05
    %v265 = vrsqrt.pop %v264
    %v266 = vmul.f32 %v175, %v265
    %v268 = vlaneseq
    %v269 = vshrl.u32 %v268, 7
    %v270 = vsub.s32 0, %v269
    %v271 = vrot.slane %v266, %v270
    %v273 = vmul.f32 %v255, %v271
    %v275 = vlaneseq
    %v276 = vshrl.u32 %v275, 7
    %v277 = vsub.s32 0, %v276
    %v278 = vrot.slane %v176, %v277
    %v280 = vadd.f32 %v273, %v278
    %v281 = vmax.f32 %v280, 0.0
    %v282 = vld [vmem:[#allocation10] sm:$0xff]
    %v283 = vld [vmem:[#allocation10 + $0x8] sm:$0xff]
    %v284 = vld [vmem:[#allocation10 + $0x10] sm:$0xff]
    %v285 = vld [vmem:[#allocation10 + $0x18] sm:$0xff]
    %v286 = vld [vmem:[#allocation10 + $0x20] sm:$0xff]
    %v287 = vld [vmem:[#allocation10 + $0x28] sm:$0xff]
    %v288 = vld [vmem:[#allocation10 + $0x30] sm:$0xff]
    %v289 = vld [vmem:[#allocation10 + $0x38] sm:$0xff]
    %v290 = vld [vmem:[#allocation10 + $0x40] sm:$0xff]
    %v291 = vld [vmem:[#allocation10 + $0x48] sm:$0xff]
    %v292 = vld [vmem:[#allocation10 + $0x50] sm:$0xff]
    %v293 = vld [vmem:[#allocation10 + $0x58] sm:$0xff]
    %v294 = vld [vmem:[#allocation10 + $0x60] sm:$0xff]
    %v295 = vld [vmem:[#allocation10 + $0x68] sm:$0xff]
    %v296 = vld [vmem:[#allocation10 + $0x70] sm:$0xff]
    %v297 = vld [vmem:[#allocation10 + $0x78] sm:$0xff]
    %v298 = vld [vmem:[#allocation11] sm:$0x1]
    %v299 = vld [vmem:[#allocation13] sm:$0x1]
    %300 = vmatprep.subr.mxu0 0.0
    %301 = vmatpush1.msra.mxu0 %v282
    %302 = vmatprep.subr.mxu0 0.0
    %303 = vmatpush1.msra.mxu0 %v283
    %304 = vmatprep.subr.mxu0 0.0
    %305 = vmatpush1.msra.mxu0 %v284
    %306 = vmatprep.subr.mxu0 0.0
    %307 = vmatpush1.msra.mxu0 %v285
    %308 = vmatprep.subr.mxu0 0.0
    %309 = vmatpush1.msra.mxu0 %v286
    %310 = vmatprep.subr.mxu0 0.0
    %311 = vmatpush1.msra.mxu0 %v287
    %312 = vmatprep.subr.mxu0 0.0
    %313 = vmatpush1.msra.mxu0 %v288
    %314 = vmatprep.subr.mxu0 0.0
    %315 = vmatpush1.msra.mxu0 %v289
    %316 = vmatprep.subr.mxu0 0.0
    %317 = vmatpush1.msra.mxu0 %v290
    %318 = vmatprep.subr.mxu0 0.0
    %319 = vmatpush1.msra.mxu0 %v291
    %320 = vmatprep.subr.mxu0 0.0
    %321 = vmatpush1.msra.mxu0 %v292
    %322 = vmatprep.subr.mxu0 0.0
    %323 = vmatpush1.msra.mxu0 %v293
    %324 = vmatprep.subr.mxu0 0.0
    %325 = vmatpush1.msra.mxu0 %v294
    %326 = vmatprep.subr.mxu0 0.0
    %327 = vmatpush1.msra.mxu0 %v295
    %328 = vmatprep.subr.mxu0 0.0
    %329 = vmatpush1.msra.mxu0 %v296
    %330 = vmatprep.subr.mxu0 0.0
    %331 = vmatpush1.msra.mxu0 %v297
    %332 = vmatprep.subr.mxu0 0.0
    %333 = vmatpush1.msra.mxu0 0.0
    %334 = vmatprep.subr.mxu0 0.0
    %335 = vmatpush1.msra.mxu0 0.0
    %336 = vmatprep.subr.mxu0 0.0
    %337 = vmatpush1.msra.mxu0 0.0
    %338 = vmatprep.subr.mxu0 0.0
    %339 = vmatpush1.msra.mxu0 0.0
    %340 = vmatprep.subr.mxu0 0.0
    %341 = vmatpush1.msra.mxu0 0.0
    %342 = vmatprep.subr.mxu0 0.0
    %343 = vmatpush1.msra.mxu0 0.0
    %344 = vmatprep.subr.mxu0 0.0
    %345 = vmatpush1.msra.mxu0 0.0
    %346 = vmatprep.subr.mxu0 0.0
    %347 = vmatpush1.msra.mxu0 0.0
    %348 = vmatprep.subr.mxu0 0.0
    %349 = vmatpush1.msra.mxu0 0.0
    %350 = vmatprep.subr.mxu0 0.0
    %351 = vmatpush1.msra.mxu0 0.0
    %352 = vmatprep.subr.mxu0 0.0
    %353 = vmatpush1.msra.mxu0 0.0
    %354 = vmatprep.subr.mxu0 0.0
    %355 = vmatpush1.msra.mxu0 0.0
    %356 = vmatprep.subr.mxu0 0.0
    %357 = vmatpush1.msra.mxu0 0.0
    %358 = vmatprep.subr.mxu0 0.0
    %359 = vmatpush1.msra.mxu0 0.0
    %360 = vmatprep.subr.mxu0 0.0
    %361 = vmatpush1.msra.mxu0 0.0
    %362 = vmatprep.subr.mxu0 0.0
    %363 = vmatpush1.msra.mxu0 0.0
    %364 = vmatprep.mubr.f32.mxu0 0.0
    %365 = vmatmul.mubr.f32.gmra.mrb[0].mxu0 %v281
    %v366 = vpop.f32.mrb[0].mxu0
    %v367 = vadd.f32 0.0, %v366
    %v368 = vpop.f32.mrb[0].mxu0
    %369 = vdwg.mxu0
    %v370 = vrot.slane %v367, 4
    %v371 = vadd.f32 %v367, %v370
    %v372 = vrot.slane %v371, 2
    %v373 = vadd.f32 %v371, %v372
    %v374 = vrot.slane %v373, 1
    %v375 = vadd.f32 %v373, %v374
    %v376 = vmul.f32 %v375, %v253
    %v377 = vsub.f32 %v367, %v376
    %v378 = vmul.f32 %v377, %v377
    %v379 = vrot.slane %v378, 4
    %v380 = vadd.f32 %v378, %v379
    %v381 = vrot.slane %v380, 2
    %v382 = vadd.f32 %v380, %v381
    %v383 = vrot.slane %v382, 1
    %v384 = vadd.f32 %v382, %v383
    %v385 = vmul.f32 %v384, %v253
    %v386 = vadd.f32 %v385, 1e-05
    %v387 = vrsqrt.pop %v386
    %v388 = vmul.f32 %v298, %v387
    %v390 = vlaneseq
    %v391 = vshrl.u32 %v390, 7
    %v392 = vsub.s32 0, %v391
    %v393 = vrot.slane %v388, %v392
    %v395 = vmul.f32 %v377, %v393
    %v397 = vlaneseq
    %v398 = vshrl.u32 %v397, 7
    %v399 = vsub.s32 0, %v398
    %v400 = vrot.slane %v299, %v399
    %v402 = vadd.f32 %v395, %v400
    %v403 = vmax.f32 %v402, 0.0
    %v404 = vld [vmem:[#allocation14] sm:$0xff]
    %v405 = vld [vmem:[#allocation14 + $0x8] sm:$0xff]
    %v406 = vld [vmem:[#allocation14 + $0x10] sm:$0xff]
    %v407 = vld [vmem:[#allocation14 + $0x18] sm:$0xff]
    %v408 = vld [vmem:[#allocation14 + $0x20] sm:$0xff]
    %v409 = vld [vmem:[#allocation14 + $0x28] sm:$0xff]
    %v410 = vld [vmem:[#allocation14 + $0x30] sm:$0xff]
    %v411 = vld [vmem:[#allocation14 + $0x38] sm:$0xff]
    %v412 = vld [vmem:[#allocation14 + $0x40] sm:$0xff]
    %v413 = vld [vmem:[#allocation14 + $0x48] sm:$0xff]
    %v414 = vld [vmem:[#allocation14 + $0x50] sm:$0xff]
    %v415 = vld [vmem:[#allocation14 + $0x58] sm:$0xff]
    %v416 = vld [vmem:[#allocation14 + $0x60] sm:$0xff]
    %v417 = vld [vmem:[#allocation14 + $0x68] sm:$0xff]
    %v418 = vld [vmem:[#allocation14 + $0x70] sm:$0xff]
    %v419 = vld [vmem:[#allocation14 + $0x78] sm:$0xff]
    %v420 = vld [vmem:[#allocation16] sm:$0x1]
    %v421 = vld [vmem:[#allocation17] sm:$0x1]
    %422 = vmatprep.subr.mxu0 0.0
    %423 = vmatpush1.msra.mxu0 %v404
    %424 = vmatprep.subr.mxu0 0.0
    %425 = vmatpush1.msra.mxu0 %v405
    %426 = vmatprep.subr.mxu0 0.0
    %427 = vmatpush1.msra.mxu0 %v406
    %428 = vmatprep.subr.mxu0 0.0
    %429 = vmatpush1.msra.mxu0 %v407
    %430 = vmatprep.subr.mxu0 0.0
    %431 = vmatpush1.msra.mxu0 %v408
    %432 = vmatprep.subr.mxu0 0.0
    %433 = vmatpush1.msra.mxu0 %v409
    %434 = vmatprep.subr.mxu0 0.0
    %435 = vmatpush1.msra.mxu0 %v410
    %436 = vmatprep.subr.mxu0 0.0
    %437 = vmatpush1.msra.mxu0 %v411
    %438 = vmatprep.subr.mxu0 0.0
    %439 = vmatpush1.msra.mxu0 %v412
    %440 = vmatprep.subr.mxu0 0.0
    %441 = vmatpush1.msra.mxu0 %v413
    %442 = vmatprep.subr.mxu0 0.0
    %443 = vmatpush1.msra.mxu0 %v414
    %444 = vmatprep.subr.mxu0 0.0
    %445 = vmatpush1.msra.mxu0 %v415
    %446 = vmatprep.subr.mxu0 0.0
    %447 = vmatpush1.msra.mxu0 %v416
    %448 = vmatprep.subr.mxu0 0.0
    %449 = vmatpush1.msra.mxu0 %v417
    %450 = vmatprep.subr.mxu0 0.0
    %451 = vmatpush1.msra.mxu0 %v418
    %452 = vmatprep.subr.mxu0 0.0
    %453 = vmatpush1.msra.mxu0 %v419
    %454 = vmatprep.subr.mxu0 0.0
    %455 = vmatpush1.msra.mxu0 0.0
    %456 = vmatprep.subr.mxu0 0.0
    %457 = vmatpush1.msra.mxu0 0.0
    %458 = vmatprep.subr.mxu0 0.0
    %459 = vmatpush1.msra.mxu0 0.0
    %460 = vmatprep.subr.mxu0 0.0
    %461 = vmatpush1.msra.mxu0 0.0
    %462 = vmatprep.subr.mxu0 0.0
    %463 = vmatpush1.msra.mxu0 0.0
    %464 = vmatprep.subr.mxu0 0.0
    %465 = vmatpush1.msra.mxu0 0.0
    %466 = vmatprep.subr.mxu0 0.0
    %467 = vmatpush1.msra.mxu0 0.0
    %468 = vmatprep.subr.mxu0 0.0
    %469 = vmatpush1.msra.mxu0 0.0
    %470 = vmatprep.subr.mxu0 0.0
    %471 = vmatpush1.msra.mxu0 0.0
    %472 = vmatprep.subr.mxu0 0.0
    %473 = vmatpush1.msra.mxu0 0.0
    %474 = vmatprep.subr.mxu0 0.0
    %475 = vmatpush1.msra.mxu0 0.0
    %476 = vmatprep.subr.mxu0 0.0
    %477 = vmatpush1.msra.mxu0 0.0
    %478 = vmatprep.subr.mxu0 0.0
    %479 = vmatpush1.msra.mxu0 0.0
    %480 = vmatprep.subr.mxu0 0.0
    %481 = vmatpush1.msra.mxu0 0.0
    %482 = vmatprep.subr.mxu0 0.0
    %483 = vmatpush1.msra.mxu0 0.0
    %484 = vmatprep.subr.mxu0 0.0
    %485 = vmatpush1.msra.mxu0 0.0
    %486 = vmatprep.mubr.f32.mxu0 0.0
    %487 = vmatmul.mubr.f32.gmra.mrb[0].mxu0 %v403
    %v488 = vpop.f32.mrb[0].mxu0
    %v489 = vadd.f32 0.0, %v488
    %v490 = vpop.f32.mrb[0].mxu0
    %491 = vdwg.mxu0
    %v492 = vrot.slane %v489, 4
    %v493 = vadd.f32 %v489, %v492
    %v494 = vrot.slane %v493, 2
    %v495 = vadd.f32 %v493, %v494
    %v496 = vrot.slane %v495, 1
    %v497 = vadd.f32 %v495, %v496
    %v498 = vmul.f32 %v497, %v253
    %v499 = vsub.f32 %v489, %v498
    %v500 = vmul.f32 %v499, %v499
    %v501 = vrot.slane %v500, 4
    %v502 = vadd.f32 %v500, %v501
    %v503 = vrot.slane %v502, 2
    %v504 = vadd.f32 %v502, %v503
    %v505 = vrot.slane %v504, 1
    %v506 = vadd.f32 %v504, %v505
    %v507 = vmul.f32 %v506, %v253
    %v508 = vadd.f32 %v507, 1e-05
    %v509 = vrsqrt.pop %v508
    %v510 = vmul.f32 %v420, %v509
    %v512 = vlaneseq
    %v513 = vshrl.u32 %v512, 7
    %v514 = vsub.s32 0, %v513
    %v515 = vrot.slane %v510, %v514
    %v517 = vmul.f32 %v499, %v515
    %v519 = vlaneseq
    %v520 = vshrl.u32 %v519, 7
    %v521 = vsub.s32 0, %v520
    %v522 = vrot.slane %v421, %v521
    %v524 = vadd.f32 %v517, %v522
    %v525 = vxor.u32 %v524, 2147483648
    %v526 = vmul.f32 %v525, 1.442695
    %v527 = vpow.pop %v526
    %v528 = vadd.f32 %v527, 1.0
    %v529 = vrcp.pop %v528
    %v530 = vmul.f32 1.0, %v529
    %531 = vst [vmem:[#allocation19] sm:$0xff] %v530
    // Predicated region
    $region82: #{tpu_custom_call.1} parent=1 // pred_check
      _
    $region83: #{tpu_custom_call.1} parent=1 // pred_check_branch
      %533 = sbr.rel (0) target = $region85
    $region84: #{tpu_custom_call.1} parent=1 // pred_region
      %s535 = ssub.s32 128, 128
      %536 = vsyncadd [#allocation4], %s535
      %s538 = sshll.u32 [#allocation19], 4
      %s539 = int_to_ptr.vmem [resolvable:$true] %s538
      %541 = dma.vmem_to_hbm [thread:$0]  %s539, 128, %s10, [#allocation4]
    $region85: #{tpu_custom_call.1} parent=1 // pred_fallthru
      _
    // Predicated region
    $region86: #{tpu_custom_call.1} parent=1 // pred_check
      _
    $region87: #{tpu_custom_call.1} parent=1 // pred_check_branch
      %543 = sbr.rel (0) target = $region89
    $region88: #{tpu_custom_call.1} parent=1 // pred_region
      %544 = dma.done [#allocation4], 128
    $region89: #{tpu_custom_call.1} parent=1 // pred_fallthru
      _
    %545 = vsyncpa [#allocation3], 1
    %546 = vsyncpa [#allocation6], 1
    %547 = vsyncpa [#allocation9], 1
    %548 = vsyncpa [#allocation12], 1
    %549 = vsyncpa [#allocation15], 1
    %550 = vsyncpa [#allocation18], 1
    %551 = vsyncpa [#allocation4], 1

</llo_original>
